<compile_context>
chip_gen: v6e
topology: v6e:2x2x1
jax: 0.10.0
libtpu: 0.0.40
codegen_flags: <defaults>
</compile_context>

<pallas_src>
import functools

import jax
import jax.numpy as jnp
from jax import lax
from jax.experimental import pallas as pl
from jax.experimental.pallas import tpu as pltpu

# Layer sizes from the PyTorch spec.
D_IN = 9    # input features
D_H1 = 9    # Linear(9, 9)
D_H2 = 3    # Linear(9, 3)
D_OUT = 1   # Linear(3, 1)

# Parameter-slab layout: one (16, 16) f32 block, VMEM-resident across the grid.
#   rows 0:9,  cols 0:9 -> W1 (out, in)      rows 0:9, col 10 -> b1
#   rows 9:12, cols 0:9 -> W2                rows 0:3, col 11 -> b2
#   row  12,   cols 0:3 -> W3                row  0,   col 12 -> b3
_P_ROWS, _P_COLS = 16, 16
_W2_ROW = D_H1               # 9
_W3_ROW = D_H1 + D_H2        # 12
_B1_COL, _B2_COL, _B3_COL = 10, 11, 12

_MAX_TILE_B = 32768          # double-buffered lane-padded x stays <= ~32 MiB


def _round_up(n, m):
    return ((n + m - 1) // m) * m


def _value_mlp_kernel(x_ref, p_ref, o_ref, *, feature_major):
    p = p_ref[...]                                   # (16, 16) param slab
    w1 = p[0:D_H1, 0:D_IN]                           # (9, 9)  (out, in)
    w2 = p[_W2_ROW:_W2_ROW + D_H2, 0:D_H1]           # (3, 9)
    w3 = p[_W3_ROW:_W3_ROW + D_OUT, 0:D_H2]          # (1, 3)
    b1 = p[0:D_H1, _B1_COL:_B1_COL + 1]              # (9, 1)
    b2 = p[0:D_H2, _B2_COL:_B2_COL + 1]              # (3, 1)
    b3 = p[0:D_OUT, _B3_COL:_B3_COL + 1]             # (1, 1)

    x = x_ref[...]
    if feature_major:
        # x is (9, tile_b), batch already on lanes: plain (9,9)@(9,tile_b) dot.
        h1 = jnp.dot(w1, x, preferred_element_type=jnp.float32)
    else:
        # x is (tile_b, 9): contract both minor dims ("A @ B^T") -- the same
        # trans-B pattern the production flash-attention kernel uses (MXU-native
        # transposed-operand feed, no XLU relayout of the big x operand).  This
        # flips batch onto LANES for the rest of the network.
        h1 = lax.dot_general(w1, x, (((1,), (1,)), ((), ())),
                             preferred_element_type=jnp.float32)
    h1 = jnp.maximum(h1 + b1, 0.0)                                        # (9, tile_b)
    h2 = jnp.maximum(
        jnp.dot(w2, h1, preferred_element_type=jnp.float32) + b2, 0.0)    # (3, tile_b)
    # Final layer (no ReLU): lane-dense (1, tile_b) store.
    o_ref[...] = jnp.dot(w3, h2, preferred_element_type=jnp.float32) + b3


def _pack_params(params):
    p = jnp.zeros((_P_ROWS, _P_COLS), jnp.float32)
    p = p.at[0:D_H1, 0:D_IN].set(params["w1"].astype(jnp.float32))
    p = p.at[_W2_ROW:_W2_ROW + D_H2, 0:D_H1].set(params["w2"].astype(jnp.float32))
    p = p.at[_W3_ROW:_W3_ROW + D_OUT, 0:D_H2].set(params["w3"].astype(jnp.float32))
    p = p.at[0:D_H1, _B1_COL].set(params["b1"].astype(jnp.float32))
    p = p.at[0:D_H2, _B2_COL].set(params["b2"].astype(jnp.float32))
    p = p.at[0:D_OUT, _B3_COL].set(params["b3"].astype(jnp.float32))
    return p


def _pick_tile(B, tile_b):
    tile_b = _round_up(max(int(tile_b), 128), 128)           # no assert trap
    tile_b = min(tile_b, _MAX_TILE_B, _round_up(B, 128))
    # Prefer >= 2 batch tiles whenever the batch is big enough so the "parallel"
    # grid axis can actually shard work across both v7x TensorCores.
    if (B + tile_b - 1) // tile_b < 2 and _round_up(B, 128) >= 256:
        tile_b = _round_up((B + 1) // 2, 128)
    return tile_b


def value_forward(x, params, *, tile_b=8192, feature_major=False):
    """Fused Value MLP forward.

    x: (B, 9) float32 (PyTorch layout), or (9, B) if feature_major=True (the
       lane-dense fast path for producers that already emit feature-major
       activations).  Returns (B, 1) float32 in both cases.
    """
    if feature_major:
        F, B = x.shape
    else:
        B, F = x.shape
    assert F == D_IN, f"expected {D_IN} input features, got {F}"

    tile_b = _pick_tile(B, tile_b)
    num_tiles = (B + tile_b - 1) // tile_b

    if feature_major:
        x_spec = pl.BlockSpec((D_IN, tile_b), lambda i: (0, i))
        x_buf_bytes = 16 * tile_b * 4            # 9 feature rows, sublane-padded to 16
    else:
        x_spec = pl.BlockSpec((tile_b, D_IN), lambda i: (i, 0))
        x_buf_bytes = tile_b * 128 * 4           # 9 features, lane-padded to 128

    out_buf_bytes = 8 * tile_b * 4               # (1, tile_b) sublane-padded to 8
    param_buf_bytes = _P_ROWS * 128 * 4
    vmem_need = 2 * (x_buf_bytes + out_buf_bytes + param_buf_bytes)
    vmem_limit = int(min(max(vmem_need + (4 << 20), 32 << 20), 48 << 20))

    out = pl.pallas_call(
        functools.partial(_value_mlp_kernel, feature_major=feature_major),
        out_shape=jax.ShapeDtypeStruct((1, B), jnp.float32),
        grid=(num_tiles,),
        in_specs=[
            x_spec,                                               # x: tiled over batch
            pl.BlockSpec((_P_ROWS, _P_COLS), lambda i: (0, 0)),   # params: VMEM-resident
        ],
        out_specs=pl.BlockSpec((1, tile_b), lambda i: (0, i)),
        compiler_params=pltpu.CompilerParams(
            dimension_semantics=("parallel",),
            vmem_limit_bytes=vmem_limit),
        cost_estimate=pl.CostEstimate(
            flops=2 * (D_IN * D_H1 + D_H1 * D_H2 + D_H2 * D_OUT) * B,
            transcendentals=0,
            bytes_accessed=(D_IN + D_OUT) * 4 * B + _P_ROWS * _P_COLS * 4),
    )(x.astype(jnp.float32), _pack_params(params))

    # (1, B) lane-dense row -> (B, 1) column: same contiguous memory, pure layout.
    return out.reshape(B, 1)


def init_params(key):
    """Deterministic synthetic init mirroring nn.Linear(9,9)/(9,3)/(3,1).

    Weights kept in PyTorch's (out_features, in_features) orientation."""
    ks = jax.random.split(key, 6)

    def linear(kw, kb, out_f, in_f):
        bound = 1.0 / jnp.sqrt(in_f)
        w = jax.random.uniform(kw, (out_f, in_f), jnp.float32, -bound, bound)
        b = jax.random.uniform(kb, (out_f,), jnp.float32, -bound, bound)
        return w, b

    w1, b1 = linear(ks[0], ks[1], D_H1, D_IN)
    w2, b2 = linear(ks[2], ks[3], D_H2, D_H1)
    w3, b3 = linear(ks[4], ks[5], D_OUT, D_H2)
    return dict(w1=w1, b1=b1, w2=w2, b2=b2, w3=w3, b3=b3)


def value_ref(x, p):
    """Pure-JAX reference (PyTorch semantics)."""
    h1 = jnp.maximum(x @ p["w1"].T + p["b1"], 0.0)
    h2 = jnp.maximum(h1 @ p["w2"].T + p["b2"], 0.0)
    return h2 @ p["w3"].T + p["b3"]


if __name__ == "__main__":
    key = jax.random.PRNGKey(0)
    k_x, k_x2, k_p = jax.random.split(key, 3)
    params = init_params(k_p)

    # Tiny-batch smoke test (B=8): a single partial 128-row tile (masked edges).
    B = 8
    x = jax.random.normal(k_x, (B, D_IN), jnp.float32)
    out = jax.block_until_ready(value_forward(x, params))
    ref = value_ref(x, params)
    assert out.shape == (B, 1), out.shape
    assert jnp.allclose(out, ref, atol=1e-4, rtol=1e-4), "mismatch vs reference (B=8)"

    # Multi-tile + ragged edge: with default args B=300 splits into 2 tiles of
    # 256 (second partial) so both v7x TensorCores get work; no jnp.pad pass.
    B2 = 300
    x2 = jax.random.normal(k_x2, (B2, D_IN), jnp.float32)
    ref2 = value_ref(x2, params)
    out2 = jax.block_until_ready(value_forward(x2, params))
    assert out2.shape == (B2, 1), out2.shape
    assert jnp.allclose(out2, ref2, atol=1e-4, rtol=1e-4), "mismatch (B=300, default tile)"

    # User-supplied tile size (rounded/handled, no assert traps).
    out2b = jax.block_until_ready(value_forward(x2, params, tile_b=128))
    assert jnp.allclose(out2b, ref2, atol=1e-4, rtol=1e-4), "mismatch (B=300, tile=128)"

    # Lane-dense feature-major fast path: x supplied as (9, B).
    out2c = jax.block_until_ready(value_forward(x2.T, params, feature_major=True))
    assert jnp.allclose(out2c, ref2, atol=1e-4, rtol=1e-4), "mismatch (feature-major)"

    print("KERNEL_OK")
</pallas_src>

<mosaic_0001>
module attributes {stable_mosaic.version = 11 : i64} {
  func.func @_value_mlp_kernel(%arg0: i32, %arg1: memref<128x9xf32, #tpu.memory_space<vmem>>, %arg2: memref<16x16xf32, #tpu.memory_space<vmem>>, %arg3: memref<1x128xf32, #tpu.memory_space<vmem>>) attributes {dimension_semantics = [#tpu.dimension_semantics<parallel>], iteration_bounds = array<i64: 1>, scalar_prefetch = 0 : i64, scratch_operands = 0 : i64, tpu.core_type = #tpu.core_type<tc>, window_params = [{transform_indices = @transform_0, window_bounds = array<i64: 128, 9>}, {pipeline_mode = #tpu.pipeline_mode<synchronous>, transform_indices = @transform_1, window_bounds = array<i64: 16, 16>}, {transform_indices = @transform_2, window_bounds = array<i64: 1, 128>}]} {
    %c0 = arith.constant 0 : index
    %c0_0 = arith.constant 0 : index
    %0 = vector.load %arg2[%c0, %c0_0] : memref<16x16xf32, #tpu.memory_space<vmem>>, vector<16x16xf32>
    %1 = vector.extract_strided_slice %0 {offsets = [0, 0], sizes = [9, 9], strides = [1, 1]} : vector<16x16xf32> to vector<9x9xf32>
    %2 = vector.extract_strided_slice %0 {offsets = [9, 0], sizes = [3, 9], strides = [1, 1]} : vector<16x16xf32> to vector<3x9xf32>
    %3 = vector.extract_strided_slice %0 {offsets = [12, 0], sizes = [1, 3], strides = [1, 1]} : vector<16x16xf32> to vector<1x3xf32>
    %4 = vector.extract_strided_slice %0 {offsets = [0, 10], sizes = [9, 1], strides = [1, 1]} : vector<16x16xf32> to vector<9x1xf32>
    %5 = vector.extract_strided_slice %0 {offsets = [0, 11], sizes = [3, 1], strides = [1, 1]} : vector<16x16xf32> to vector<3x1xf32>
    %6 = vector.extract_strided_slice %0 {offsets = [0, 12], sizes = [1, 1], strides = [1, 1]} : vector<16x16xf32> to vector<1x1xf32>
    %c0_1 = arith.constant 0 : index
    %c0_2 = arith.constant 0 : index
    %7 = vector.load %arg1[%c0_1, %c0_2] : memref<128x9xf32, #tpu.memory_space<vmem>>, vector<128x9xf32>
    %cst = arith.constant dense<0.000000e+00> : vector<9x128xf32>
    %8 = tpu.matmul %1, %7, %cst {dimension_numbers = #tpu.dot_dimension_numbers<[1], [1], [0], [0], [0, 0, 1, 0], [], []>} : vector<9x9xf32>, vector<128x9xf32>, vector<9x128xf32> -> vector<9x128xf32>
    %9 = vector.broadcast %4 : vector<9x1xf32> to vector<9x128xf32>
    %10 = arith.addf %8, %9 : vector<9x128xf32>
    %cst_3 = arith.constant 0.000000e+00 : f32
    %11 = vector.broadcast %cst_3 : f32 to vector<9x128xf32>
    %12 = arith.maximumf %10, %11 : vector<9x128xf32>
    %cst_4 = arith.constant dense<0.000000e+00> : vector<3x128xf32>
    %13 = tpu.matmul %2, %12, %cst_4 {dimension_numbers = #tpu.dot_dimension_numbers<[1], [0], [0], [1], [0, 0, 1, 1], [], []>} : vector<3x9xf32>, vector<9x128xf32>, vector<3x128xf32> -> vector<3x128xf32>
    %14 = vector.broadcast %5 : vector<3x1xf32> to vector<3x128xf32>
    %15 = arith.addf %13, %14 : vector<3x128xf32>
    %cst_5 = arith.constant 0.000000e+00 : f32
    %16 = vector.broadcast %cst_5 : f32 to vector<3x128xf32>
    %17 = arith.maximumf %15, %16 : vector<3x128xf32>
    %cst_6 = arith.constant dense<0.000000e+00> : vector<1x128xf32>
    %18 = tpu.matmul %3, %17, %cst_6 {dimension_numbers = #tpu.dot_dimension_numbers<[1], [0], [0], [1], [0, 0, 1, 1], [], []>} : vector<1x3xf32>, vector<3x128xf32>, vector<1x128xf32> -> vector<1x128xf32>
    %19 = vector.broadcast %6 : vector<1x1xf32> to vector<1x128xf32>
    %20 = arith.addf %18, %19 : vector<1x128xf32>
    %c0_7 = arith.constant 0 : index
    %c0_8 = arith.constant 0 : index
    %21 = vector.load %arg3[%c0_7, %c0_8] : memref<1x128xf32, #tpu.memory_space<vmem>>, vector<1x128xf32>
    tpu.vector_store %arg3[%c0_7, %c0_8], %20 {strides = array<i32>} : memref<1x128xf32, #tpu.memory_space<vmem>>, vector<1x128xf32>,
    return
  }
  func.func @transform_0(%arg0: i32) -> (i32, i32) {
    %c0_i32 = arith.constant 0 : i32
    %c0_i32_0 = arith.constant 0 : i32
    return %arg0, %c0_i32 : i32, i32
  }
  func.func @transform_1(%arg0: i32) -> (i32, i32) {
    %c0_i32 = arith.constant 0 : i32
    %c0_i32_0 = arith.constant 0 : i32
    %c0_i32_1 = arith.constant 0 : i32
    return %c0_i32, %c0_i32_0 : i32, i32
  }
  func.func @transform_2(%arg0: i32) -> (i32, i32) {
    %c0_i32 = arith.constant 0 : i32
    %c0_i32_0 = arith.constant 0 : i32
    return %c0_i32, %arg0 : i32, i32
  }
}

</mosaic_0001>

<llo_original>
// kernel: tpu_custom_call.1
$region0: #{tpu_custom_call.1}
  #allocation0 [shape = 'u32[]', space=smem, size = 0x4, offset = 0x4, fixed_abs, tag = 'smem constant byte address 0x4 - core index']
  #allocation1 [shape = 'u32[144,128]{1,0:T(1,128)}', space=vmem, size = 0x12000, scoped, tag = 'internal scratch']
  %s0 = inlined_call_operand.hbm [shape: f32[8,9], index: 0, kind: input, shape index: {}]
  %s1 = inlined_call_operand.hbm [shape: f32[16,16], index: 1, kind: input, shape index: {}]
  %s2 = inlined_call_operand.hbm [shape: f32[1,8], index: 2, kind: output, shape index: {}]
  %s3 = sld [smem:[#allocation0]]
  $region26: #{tpu_custom_call.1} parent=0
    _
  %s5 = ssub.s32 1, %s3
  %s6 = scalar_select 0, %s5, %s3
  $region1: #{tpu_custom_call.1} parent=0
    #allocation2 [shape = 'u8[65536]{0}', space=vmem, size = 0x10000, scoped, tag = 'input window, operand 0, single buffered']
    #allocation3 [shape = 's32[1]{0}', space=sflag, size = 0x4, scoped, tag = 'scoped memory for tpu_custom_call.1']
    #allocation4 [shape = 's32[1]{0}', space=sflag, size = 0x4, scoped, tag = 'scoped memory for tpu_custom_call.1']
    #allocation5 [shape = 'u8[8192]{0}', space=vmem, size = 0x2000, scoped, tag = 'input window, operand 1, single buffered']
    #allocation6 [shape = 's32[1]{0}', space=sflag, size = 0x4, scoped, tag = 'scoped memory for tpu_custom_call.1']
    #allocation7 [shape = 'u8[512]{0}', space=vmem, size = 0x400, scoped, tag = 'output window, operand 0, single buffered']
    %7 = vsyncpa [#allocation3], 0
    %8 = vsyncpa [#allocation6], 0
    %9 = vsyncpa [#allocation4], 0
    // Predicated region
    $region2: #{tpu_custom_call.1} parent=1 // pred_check
      _
    $region3: #{tpu_custom_call.1} parent=1 // pred_check_branch
      %11 = sbr.rel (0) target = $region5
    $region4: #{tpu_custom_call.1} parent=1 // pred_region
      %s13 = ssub.s32 2048, 128
      %14 = vsyncadd [#allocation3], %s13
      %s15 = sshll.u32 [#allocation2], 4
      %s16 = int_to_ptr.vmem [resolvable:$true] %s15
      %21 = dma.hbm_to_vmem [thread:$0]  %s0, 128, %s16, [#allocation3], 128, 128, 8
    $region5: #{tpu_custom_call.1} parent=1 // pred_fallthru
      _
    // Predicated region
    $region6: #{tpu_custom_call.1} parent=1 // pred_check
      _
    $region7: #{tpu_custom_call.1} parent=1 // pred_check_branch
      %23 = sbr.rel (0) target = $region9
    $region8: #{tpu_custom_call.1} parent=1 // pred_region
      %s25 = ssub.s32 256, 256
      %26 = vsyncadd [#allocation6], %s25
      %s27 = sshll.u32 [#allocation5], 4
      %s28 = int_to_ptr.vmem [resolvable:$true] %s27
      %33 = dma.hbm_to_vmem [thread:$0]  %s1, 256, %s28, [#allocation6], 128, 128, 8
    $region9: #{tpu_custom_call.1} parent=1 // pred_fallthru
      _
    // Predicated region
    $region10: #{tpu_custom_call.1} parent=1 // pred_check
      _
    $region11: #{tpu_custom_call.1} parent=1 // pred_check_branch
      %35 = sbr.rel (0) target = $region13
    $region12: #{tpu_custom_call.1} parent=1 // pred_region
      %36 = dma.done [#allocation3], 2048
    $region13: #{tpu_custom_call.1} parent=1 // pred_fallthru
      _
    // Predicated region
    $region14: #{tpu_custom_call.1} parent=1 // pred_check
      _
    $region15: #{tpu_custom_call.1} parent=1 // pred_check_branch
      %38 = sbr.rel (0) target = $region17
    $region16: #{tpu_custom_call.1} parent=1 // pred_region
      %39 = dma.done [#allocation6], 256
    $region17: #{tpu_custom_call.1} parent=1 // pred_fallthru
      _
    %v40 = vld [vmem:[#allocation5] sm:$0xff]
    %v41 = vld [vmem:[#allocation5 + $0x8] sm:$0xff]
    %v42 = vld [vmem:[#allocation2] sm:$0xff]
    %v43 = vld [vmem:[#allocation2 + $0x8] sm:$0xff]
    %v44 = vld [vmem:[#allocation2 + $0x10] sm:$0xff]
    %v45 = vld [vmem:[#allocation2 + $0x18] sm:$0xff]
    %v46 = vld [vmem:[#allocation2 + $0x20] sm:$0xff]
    %v47 = vld [vmem:[#allocation2 + $0x28] sm:$0xff]
    %v48 = vld [vmem:[#allocation2 + $0x30] sm:$0xff]
    %v49 = vld [vmem:[#allocation2 + $0x38] sm:$0xff]
    %v50 = vld [vmem:[#allocation2 + $0x40] sm:$0xff]
    %v51 = vld [vmem:[#allocation2 + $0x48] sm:$0xff]
    %v52 = vld [vmem:[#allocation2 + $0x50] sm:$0xff]
    %v53 = vld [vmem:[#allocation2 + $0x58] sm:$0xff]
    %v54 = vld [vmem:[#allocation2 + $0x60] sm:$0xff]
    %v55 = vld [vmem:[#allocation2 + $0x68] sm:$0xff]
    %v56 = vld [vmem:[#allocation2 + $0x70] sm:$0xff]
    %v57 = vld [vmem:[#allocation2 + $0x78] sm:$0xff]
    %59 = vset.pattern.permute.xlu0 10
    %60 = vperm.xlu0 %59, %v40
    %v61 = vpop.permute.xlu0 %60
    %64 = vset.pattern.permute.xlu0 10
    %65 = vperm.xlu0 %64, %v41
    %v66 = vpop.permute.xlu0 %65
    %vm68 = vcmask 72704
    %v69 = vsel %vm68, %v40, 0
    %v71 = vsel %vm68, %v41, 0
    %v74 = vsel %vm68, %v42, 0
    %v77 = vsel %vm68, %v43, 0
    %v80 = vsel %vm68, %v44, 0
    %v83 = vsel %vm68, %v45, 0
    %v86 = vsel %vm68, %v46, 0
    %v89 = vsel %vm68, %v47, 0
    %v92 = vsel %vm68, %v48, 0
    %v95 = vsel %vm68, %v49, 0
    %v98 = vsel %vm68, %v50, 0
    %v101 = vsel %vm68, %v51, 0
    %v104 = vsel %vm68, %v52, 0
    %v107 = vsel %vm68, %v53, 0
    %v110 = vsel %vm68, %v54, 0
    %v113 = vsel %vm68, %v55, 0
    %v116 = vsel %vm68, %v56, 0
    %v119 = vsel %vm68, %v57, 0
    %121 = vmatprep.subr.mxu0 0.0
    %122 = vmatpush1.xpose.msra.mxu0 %v119
    %123 = vmatprep.subr.mxu0 0.0
    %124 = vmatpush1.xpose.msra.mxu0 %v116
    %125 = vmatprep.subr.mxu0 0.0
    %126 = vmatpush1.xpose.msra.mxu0 %v113
    %127 = vmatprep.subr.mxu0 0.0
    %128 = vmatpush1.xpose.msra.mxu0 %v110
    %129 = vmatprep.subr.mxu0 0.0
    %130 = vmatpush1.xpose.msra.mxu0 %v107
    %131 = vmatprep.subr.mxu0 0.0
    %132 = vmatpush1.xpose.msra.mxu0 %v104
    %133 = vmatprep.subr.mxu0 0.0
    %134 = vmatpush1.xpose.msra.mxu0 %v101
    %135 = vmatprep.subr.mxu0 0.0
    %136 = vmatpush1.xpose.msra.mxu0 %v98
    %137 = vmatprep.subr.mxu0 0.0
    %138 = vmatpush1.xpose.msra.mxu0 %v95
    %139 = vmatprep.subr.mxu0 0.0
    %140 = vmatpush1.xpose.msra.mxu0 %v92
    %141 = vmatprep.subr.mxu0 0.0
    %142 = vmatpush1.xpose.msra.mxu0 %v89
    %143 = vmatprep.subr.mxu0 0.0
    %144 = vmatpush1.xpose.msra.mxu0 %v86
    %145 = vmatprep.subr.mxu0 0.0
    %146 = vmatpush1.xpose.msra.mxu0 %v83
    %147 = vmatprep.subr.mxu0 0.0
    %148 = vmatpush1.xpose.msra.mxu0 %v80
    %149 = vmatprep.subr.mxu0 0.0
    %150 = vmatpush1.xpose.msra.mxu0 %v77
    %151 = vmatprep.subr.mxu0 0.0
    %152 = vmatpush1.xpose.msra.mxu0 %v74
    %153 = vmatprep.subr.mxu0 0.0
    %154 = vmatpush2.xpose.msra.mxu0 0.0
    %155 = vmatprep.subr.mxu0 0.0
    %156 = vmatpush2.xpose.msra.mxu0 0.0
    %157 = vmatprep.subr.mxu0 0.0
    %158 = vmatpush2.xpose.msra.mxu0 0.0
    %159 = vmatprep.subr.mxu0 0.0
    %160 = vmatpush2.xpose.msra.mxu0 0.0
    %161 = vmatprep.subr.mxu0 0.0
    %162 = vmatpush2.xpose.msra.mxu0 0.0
    %163 = vmatprep.subr.mxu0 0.0
    %164 = vmatpush2.xpose.msra.mxu0 0.0
    %165 = vmatprep.subr.mxu0 0.0
    %166 = vmatpush2.xpose.msra.mxu0 0.0
    %167 = vmatprep.subr.mxu0 0.0
    %168 = vmatpush2.xpose.msra.mxu0 0.0
    %169 = vmatprep.subr.mxu0 0.0
    %170 = vmatpush2.xpose.msra.mxu0 0.0
    %171 = vmatprep.subr.mxu0 0.0
    %172 = vmatpush2.xpose.msra.mxu0 0.0
    %173 = vmatprep.subr.mxu0 0.0
    %174 = vmatpush2.xpose.msra.mxu0 0.0
    %175 = vmatprep.subr.mxu0 0.0
    %176 = vmatpush2.xpose.msra.mxu0 0.0
    %177 = vmatprep.subr.mxu0 0.0
    %178 = vmatpush2.xpose.msra.mxu0 0.0
    %179 = vmatprep.subr.mxu0 0.0
    %180 = vmatpush2.xpose.msra.mxu0 0.0
    %181 = vmatprep.subr.mxu0 0.0
    %182 = vmatpush2.xpose.msra.mxu0 0.0
    %183 = vmatprep.subr.mxu0 0.0
    %184 = vmatpush2.xpose.msra.mxu0 0.0
    %185 = vmatprep.mubr.f32.mxu0 0.0
    %186 = vmatmul.mubr.f32.gmra.mxu0 %v69
    %v187 = vpop.f32.mrf.mxu0
    %v188 = vadd.f32 %v61, %v187
    %v189 = vpop.f32.mrf.mxu0
    %190 = vmatprep.mubr.f32.mxu0 0.0
    %191 = vmatmul.mubr.f32.gmra.mxu0 %v71
    %v192 = vpop.f32.mrf.mxu0
    %v193 = vadd.f32 %v66, %v192
    %v194 = vpop.f32.mrf.mxu0
    %195 = vdwg.mxu0
    %v196 = vmax.f32 %v188, 0.0
    %v197 = vmax.f32 %v193, 0.0
    %198 = vset.pattern.permute.xlu0 11
    %199 = vperm.xlu0 %198, %v40
    %v200 = vpop.permute.xlu0 %199
    %v202 = vrot.slane %v41, 1
    %v203 = vsel %vm68, %v202, 0
    %vm205 = vcmask 1040384
    %v207 = vsel %vm205, %v197, 0
    %209 = vmatprep.subr.mxu0 0.0
    %210 = vmatpush1.msra.mxu0 0.0
    %211 = vmatprep.subr.mxu0 0.0
    %212 = vmatpush1.msra.mxu0 0.0
    %213 = vmatprep.subr.mxu0 0.0
    %214 = vmatpush1.msra.mxu0 0.0
    %215 = vmatprep.subr.mxu0 0.0
    %216 = vmatpush1.msra.mxu0 0.0
    %217 = vmatprep.subr.mxu0 0.0
    %218 = vmatpush1.msra.mxu0 0.0
    %219 = vmatprep.subr.mxu0 0.0
    %220 = vmatpush1.msra.mxu0 0.0
    %221 = vmatprep.subr.mxu0 0.0
    %222 = vmatpush1.msra.mxu0 0.0
    %223 = vmatprep.subr.mxu0 0.0
    %224 = vmatpush1.msra.mxu0 0.0
    %225 = vmatprep.subr.mxu0 0.0
    %226 = vmatpush1.msra.mxu0 0.0
    %227 = vmatprep.subr.mxu0 0.0
    %228 = vmatpush1.msra.mxu0 0.0
    %229 = vmatprep.subr.mxu0 0.0
    %230 = vmatpush1.msra.mxu0 0.0
    %231 = vmatprep.subr.mxu0 0.0
    %232 = vmatpush1.msra.mxu0 0.0
    %233 = vmatprep.subr.mxu0 0.0
    %234 = vmatpush1.msra.mxu0 0.0
    %235 = vmatprep.subr.mxu0 0.0
    %236 = vmatpush1.msra.mxu0 0.0
    %237 = vmatprep.subr.mxu0 0.0
    %238 = vmatpush1.msra.mxu0 %v207
    %239 = vmatprep.subr.mxu0 0.0
    %240 = vmatpush1.msra.mxu0 %v196
    %241 = vmatprep.subr.mxu0 0.0
    %242 = vmatpush2.msra.mxu0 0.0
    %243 = vmatprep.subr.mxu0 0.0
    %244 = vmatpush2.msra.mxu0 0.0
    %245 = vmatprep.subr.mxu0 0.0
    %246 = vmatpush2.msra.mxu0 0.0
    %247 = vmatprep.subr.mxu0 0.0
    %248 = vmatpush2.msra.mxu0 0.0
    %249 = vmatprep.subr.mxu0 0.0
    %250 = vmatpush2.msra.mxu0 0.0
    %251 = vmatprep.subr.mxu0 0.0
    %252 = vmatpush2.msra.mxu0 0.0
    %253 = vmatprep.subr.mxu0 0.0
    %254 = vmatpush2.msra.mxu0 0.0
    %255 = vmatprep.subr.mxu0 0.0
    %256 = vmatpush2.msra.mxu0 0.0
    %257 = vmatprep.subr.mxu0 0.0
    %258 = vmatpush2.msra.mxu0 0.0
    %259 = vmatprep.subr.mxu0 0.0
    %260 = vmatpush2.msra.mxu0 0.0
    %261 = vmatprep.subr.mxu0 0.0
    %262 = vmatpush2.msra.mxu0 0.0
    %263 = vmatprep.subr.mxu0 0.0
    %264 = vmatpush2.msra.mxu0 0.0
    %265 = vmatprep.subr.mxu0 0.0
    %266 = vmatpush2.msra.mxu0 0.0
    %267 = vmatprep.subr.mxu0 0.0
    %268 = vmatpush2.msra.mxu0 0.0
    %269 = vmatprep.subr.mxu0 0.0
    %270 = vmatpush2.msra.mxu0 0.0
    %271 = vmatprep.subr.mxu0 0.0
    %272 = vmatpush2.msra.mxu0 0.0
    %273 = vmatprep.mubr.f32.mxu0 0.0
    %274 = vmatmul.mubr.f32.gmra.mxu0 %v203
    %v275 = vpop.f32.mrf.mxu0
    %v276 = vadd.f32 %v200, %v275
    %v277 = vpop.f32.mrf.mxu0
    %278 = vdwg.mxu0
    %v279 = vmax.f32 %v276, 0.0
    %280 = vset.pattern.permute.xlu0 12
    %281 = vperm.xlu0 %280, %v40
    %v282 = vpop.permute.xlu0 %281
    %v284 = vrot.slane %v41, 4
    %vm285 = vcmask 23552
    %v286 = vsel %vm285, %v284, 0
    %vm288 = vcmask 1042432
    %v290 = vsel %vm288, %v279, 0
    %292 = vmatprep.subr.mxu0 0.0
    %293 = vmatpush1.msra.mxu0 0.0
    %294 = vmatprep.subr.mxu0 0.0
    %295 = vmatpush1.msra.mxu0 0.0
    %296 = vmatprep.subr.mxu0 0.0
    %297 = vmatpush1.msra.mxu0 0.0
    %298 = vmatprep.subr.mxu0 0.0
    %299 = vmatpush1.msra.mxu0 0.0
    %300 = vmatprep.subr.mxu0 0.0
    %301 = vmatpush1.msra.mxu0 0.0
    %302 = vmatprep.subr.mxu0 0.0
    %303 = vmatpush1.msra.mxu0 0.0
    %304 = vmatprep.subr.mxu0 0.0
    %305 = vmatpush1.msra.mxu0 0.0
    %306 = vmatprep.subr.mxu0 0.0
    %307 = vmatpush1.msra.mxu0 0.0
    %308 = vmatprep.subr.mxu0 0.0
    %309 = vmatpush1.msra.mxu0 0.0
    %310 = vmatprep.subr.mxu0 0.0
    %311 = vmatpush1.msra.mxu0 0.0
    %312 = vmatprep.subr.mxu0 0.0
    %313 = vmatpush1.msra.mxu0 0.0
    %314 = vmatprep.subr.mxu0 0.0
    %315 = vmatpush1.msra.mxu0 0.0
    %316 = vmatprep.subr.mxu0 0.0
    %317 = vmatpush1.msra.mxu0 0.0
    %318 = vmatprep.subr.mxu0 0.0
    %319 = vmatpush1.msra.mxu0 0.0
    %320 = vmatprep.subr.mxu0 0.0
    %321 = vmatpush1.msra.mxu0 0.0
    %322 = vmatprep.subr.mxu0 0.0
    %323 = vmatpush1.msra.mxu0 %v290
    %324 = vmatprep.subr.mxu0 0.0
    %325 = vmatpush2.msra.mxu0 0.0
    %326 = vmatprep.subr.mxu0 0.0
    %327 = vmatpush2.msra.mxu0 0.0
    %328 = vmatprep.subr.mxu0 0.0
    %329 = vmatpush2.msra.mxu0 0.0
    %330 = vmatprep.subr.mxu0 0.0
    %331 = vmatpush2.msra.mxu0 0.0
    %332 = vmatprep.subr.mxu0 0.0
    %333 = vmatpush2.msra.mxu0 0.0
    %334 = vmatprep.subr.mxu0 0.0
    %335 = vmatpush2.msra.mxu0 0.0
    %336 = vmatprep.subr.mxu0 0.0
    %337 = vmatpush2.msra.mxu0 0.0
    %338 = vmatprep.subr.mxu0 0.0
    %339 = vmatpush2.msra.mxu0 0.0
    %340 = vmatprep.subr.mxu0 0.0
    %341 = vmatpush2.msra.mxu0 0.0
    %342 = vmatprep.subr.mxu0 0.0
    %343 = vmatpush2.msra.mxu0 0.0
    %344 = vmatprep.subr.mxu0 0.0
    %345 = vmatpush2.msra.mxu0 0.0
    %346 = vmatprep.subr.mxu0 0.0
    %347 = vmatpush2.msra.mxu0 0.0
    %348 = vmatprep.subr.mxu0 0.0
    %349 = vmatpush2.msra.mxu0 0.0
    %350 = vmatprep.subr.mxu0 0.0
    %351 = vmatpush2.msra.mxu0 0.0
    %352 = vmatprep.subr.mxu0 0.0
    %353 = vmatpush2.msra.mxu0 0.0
    %354 = vmatprep.subr.mxu0 0.0
    %355 = vmatpush2.msra.mxu0 0.0
    %356 = vmatprep.mubr.f32.mxu0 0.0
    %357 = vmatmul.mubr.f32.gmra.mxu0 %v286
    %v358 = vpop.f32.mrf.mxu0
    %v359 = vadd.f32 %v282, %v358
    %v360 = vpop.f32.mrf.mxu0
    %361 = vdwg.mxu0
    %362 = vst [vmem:[#allocation7] sm:$0x1] %v359
    // Predicated region
    $region18: #{tpu_custom_call.1} parent=1 // pred_check
      _
    $region19: #{tpu_custom_call.1} parent=1 // pred_check_branch
      %364 = sbr.rel (0) target = $region21
    $region20: #{tpu_custom_call.1} parent=1 // pred_region
      %s366 = ssub.s32 16, 16
      %367 = vsyncadd [#allocation4], %s366
      %s369 = sshll.u32 [#allocation7], 4
      %s370 = int_to_ptr.vmem [resolvable:$true] %s369
      %372 = dma.vmem_to_hbm [thread:$0]  %s370, 16, %s2, [#allocation4]
    $region21: #{tpu_custom_call.1} parent=1 // pred_fallthru
      _
    // Predicated region
    $region22: #{tpu_custom_call.1} parent=1 // pred_check
      _
    $region23: #{tpu_custom_call.1} parent=1 // pred_check_branch
      %374 = sbr.rel (0) target = $region25
    $region24: #{tpu_custom_call.1} parent=1 // pred_region
      %375 = dma.done [#allocation4], 16
    $region25: #{tpu_custom_call.1} parent=1 // pred_fallthru
      _
    %376 = vsyncpa [#allocation3], 1
    %377 = vsyncpa [#allocation6], 1
    %378 = vsyncpa [#allocation4], 1

</llo_original>
